<compile_context>
chip_gen: v6e
topology: v6e:2x2x1
jax: 0.10.0
libtpu: 0.0.40
codegen_flags: <defaults>
</compile_context>

<pallas_src>
import jax
import jax.numpy as jnp
from jax.experimental import pallas as pl
from jax.experimental.pallas import tpu as pltpu


def _pos_extraction_kernel(x_ref, w1_ref, t1_ref, w2_ref, t2_ref, o_ref):
    """Fused stack of ConvBNReLURes1D blocks on one channels-first (C, TG) tile.

    x_ref:  (1, C, TG)       activation tile (points on the lane axis), compute dtype
    w1_ref: (blocks, Ch, C)  net1 weight with BN scale folded in (bf16)
    t1_ref: (blocks, Ch, 1)  net1 folded conv-bias + BN shift (f32)
    w2_ref: (blocks, C, Ch)  net2 weight with BN scale folded in (bf16)
    t2_ref: (blocks, C, 1)   net2 folded conv-bias + BN shift (f32)
    o_ref:  (1, C, TG)       output tile, compute dtype
    """
    x = x_ref[0].astype(jnp.float32)                           # (C, TG) f32 residual
    n_blocks = w1_ref.shape[0]                                 # static
    for blk in range(n_blocks):
        w1 = w1_ref[blk]                                       # (Ch, C)  bf16
        w2 = w2_ref[blk]                                       # (C, Ch)  bf16
        # net1: Conv1d(k=1) + BN (folded) -> ReLU   [bf16 MXU, f32 accumulate]
        h = jnp.dot(w1, x.astype(w1.dtype),
                    preferred_element_type=jnp.float32)        # (Ch, TG)
        h = jnp.maximum(h + t1_ref[blk], 0.0)
        # net2: Conv1d(k=1) + BN (folded)
        y = jnp.dot(w2, h.astype(w2.dtype),
                    preferred_element_type=jnp.float32)        # (C, TG)
        y = y + t2_ref[blk]
        # residual + activation
        x = jnp.maximum(y + x, 0.0)
    o_ref[0] = x.astype(o_ref.dtype)


def _vmem_budget_bytes():
    """Scoped-VMEM budget for this kernel: half of physical, capped at 64 MiB."""
    phys = 64 << 20                                            # conservative (v7x / unknown)
    try:
        info = pltpu.get_tpu_info()
        phys = int(getattr(info, "vmem_capacity_bytes", phys)) or phys
    except Exception:
        pass
    return min(phys // 2, 64 << 20)                            # v5e/v6e: 64 MiB, v7x: 32 MiB


def _plan_tiling(b, c, gp, weight_bytes, act_itemsize, budget_bytes, max_tile=4096):
    """Pick the largest multiple-of-128 point tile dividing gp that fits VMEM and
    keeps >= 2 grid steps when B == 1 (so both v7x TensorCores get work)."""
    per_col128 = 2 * 2 * c * 128 * act_itemsize       # 2 buffers x (in + out) x C x 128 lanes
    avail = max(budget_bytes - weight_bytes, per_col128)
    max_cols_budget = max(avail // per_col128, 1)
    max_cols_steps = gp // 128 if b >= 2 else max(gp // 256, 1)
    max_cols = int(min(max_cols_budget, max_cols_steps, max_tile // 128))
    tg = 128
    for cols in range(max_cols, 0, -1):
        cand = cols * 128
        if gp % cand == 0:
            tg = cand
            break
    return tg


def pos_extraction(x_bdg, params, compute_dtype=jnp.bfloat16):
    """Forward pass, channels-first like the PyTorch module.  x_bdg: (B, D, G).

    Activations are carried through HBM in `compute_dtype` (default bf16); the
    output is returned in `compute_dtype`.
    """
    B, C, G = x_bdg.shape
    w1, t1, w2, t2 = params["w1"], params["t1"], params["w2"], params["t2"]

    # ---- VMEM budgeting ----------------------------------------------------
    budget = _vmem_budget_bytes()
    # Weight/shift slabs, counted twice (pipeliner may double-buffer them).
    weight_bytes = 2 * sum(int(a.size) * a.dtype.itemsize for a in (w1, t1, w2, t2))
    act_itemsize = jnp.dtype(compute_dtype).itemsize

    gp = ((G + 127) // 128) * 128                       # pad points to lane-dense width
    tg = _plan_tiling(B, C, gp, weight_bytes, act_itemsize, budget)
    grid = (B, gp // tg)

    # ---- prepare input (cast + pad) ----------------------------------------
    made_copy = (x_bdg.dtype != jnp.dtype(compute_dtype)) or (gp != G)
    x_in = x_bdg.astype(compute_dtype)
    if gp != G:
        x_in = jnp.pad(x_in, ((0, 0), (0, 0), (0, gp - G)))

    inv = lambda b, g: (0, 0, 0)    # block-index-invariant: weights stay resident in VMEM

    out = pl.pallas_call(
        _pos_extraction_kernel,
        out_shape=jax.ShapeDtypeStruct((B, C, gp), jnp.dtype(compute_dtype)),
        grid_spec=pltpu.PrefetchScalarGridSpec(
            num_scalar_prefetch=0,
            grid=grid,
            in_specs=[
                pl.BlockSpec((1, C, tg), lambda b, g: (b, 0, g)),
                pl.BlockSpec(w1.shape, inv),
                pl.BlockSpec(t1.shape, inv),
                pl.BlockSpec(w2.shape, inv),
                pl.BlockSpec(t2.shape, inv),
            ],
            out_specs=pl.BlockSpec((1, C, tg), lambda b, g: (b, 0, g)),
        ),
        compiler_params=pltpu.CompilerParams(
            dimension_semantics=("parallel", "parallel"),
            vmem_limit_bytes=int(budget)),
        # Donate x only when the wrapper provably made a fresh copy above.
        input_output_aliases=({0: 0} if made_copy else {}),
    )(x_in, w1, t1, w2, t2)

    return out[:, :, :G] if gp != G else out


def _fold_conv_bn(w, b, gamma, beta, mean, var, eps=1e-5):
    """Fold Conv1d(k=1)+bias and eval-mode BatchNorm1d into weight + shift.

    BN(W @ x + b) == (scale[:, None] * W) @ x + ((b - mean) * scale + beta)
    with scale = gamma / sqrt(var + eps), per output channel.
    """
    scale = gamma / jnp.sqrt(var + eps)
    return w * scale[:, None], (b - mean) * scale + beta


def init_pos_extraction_params(key, channels, blocks=1, res_expansion=1.0, eps=1e-5):
    """Deterministic synthetic parameters, folded + stacked across blocks."""
    ch_hidden = int(channels * res_expansion)
    w1s, t1s, w2s, t2s = [], [], [], []
    for blk in range(blocks):
        keys = jax.random.split(jax.random.fold_in(key, blk), 8)
        # Conv weights / biases (PyTorch shapes with k=1 squeezed: (Cout, Cin))
        w1 = jax.random.normal(keys[0], (ch_hidden, channels), jnp.float32) * 0.1
        b1 = jax.random.normal(keys[1], (ch_hidden,), jnp.float32) * 0.1
        w2 = jax.random.normal(keys[2], (channels, ch_hidden), jnp.float32) * 0.1
        b2 = jax.random.normal(keys[3], (channels,), jnp.float32) * 0.1
        # BatchNorm params (gamma, beta, running_mean, running_var)
        g1 = 1.0 + 0.1 * jax.random.normal(keys[4], (ch_hidden,), jnp.float32)
        be1 = 0.1 * jax.random.normal(keys[5], (ch_hidden,), jnp.float32)
        m1 = jnp.zeros((ch_hidden,), jnp.float32)
        v1 = jnp.ones((ch_hidden,), jnp.float32)
        g2 = 1.0 + 0.1 * jax.random.normal(keys[6], (channels,), jnp.float32)
        be2 = 0.1 * jax.random.normal(keys[7], (channels,), jnp.float32)
        m2 = jnp.zeros((channels,), jnp.float32)
        v2 = jnp.ones((channels,), jnp.float32)

        w1f, t1f = _fold_conv_bn(w1, b1, g1, be1, m1, v1, eps)
        w2f, t2f = _fold_conv_bn(w2, b2, g2, be2, m2, v2, eps)
        w1s.append(w1f); t1s.append(t1f)
        w2s.append(w2f); t2s.append(t2f)
    return dict(
        w1=jnp.stack(w1s).astype(jnp.bfloat16),            # (blocks, Ch, C)
        t1=jnp.stack(t1s)[:, :, None].astype(jnp.float32), # (blocks, Ch, 1)
        w2=jnp.stack(w2s).astype(jnp.bfloat16),            # (blocks, C, Ch)
        t2=jnp.stack(t2s)[:, :, None].astype(jnp.float32), # (blocks, C, 1)
    )


def _reference(x_bdg, params, compute_dtype=jnp.bfloat16):
    """Pure-JAX reference with identical bf16-HBM / bf16-MXU / f32-accumulate semantics."""
    x = x_bdg.astype(compute_dtype).astype(jnp.float32)      # (B, C, G)
    n_blocks = params["w1"].shape[0]
    for blk in range(n_blocks):
        w1, t1 = params["w1"][blk], params["t1"][blk]
        w2, t2 = params["w2"][blk], params["t2"][blk]
        h = jnp.einsum("oc,bcg->bog", w1, x.astype(jnp.bfloat16),
                       preferred_element_type=jnp.float32)
        h = jnp.maximum(h + t1[None], 0.0)
        y = jnp.einsum("co,bog->bcg", w2, h.astype(jnp.bfloat16),
                       preferred_element_type=jnp.float32)
        y = y + t2[None]
        x = jnp.maximum(y + x, 0.0)
    return x.astype(compute_dtype)


if __name__ == "__main__":
    key = jax.random.PRNGKey(0)
    B, D, G = 2, 16, 256            # input[b, d, g] per the module docstring
    blocks = 2

    kx, kp = jax.random.split(key)
    x = jax.random.normal(kx, (B, D, G), jnp.float32)
    params = init_pos_extraction_params(kp, channels=D, blocks=blocks,
                                        res_expansion=1.0)

    out = jax.block_until_ready(pos_extraction(x, params))
    ref = _reference(x, params)

    assert out.shape == (B, D, G)
    assert out.dtype == jnp.bfloat16
    assert jnp.allclose(out.astype(jnp.float32), ref.astype(jnp.float32),
                        atol=2e-2, rtol=2e-2), "mismatch vs reference"

    print("KERNEL_OK")
</pallas_src>

<mosaic_0001>
module attributes {stable_mosaic.version = 11 : i64} {
  func.func @_pos_extraction_kernel(%arg0: i32, %arg1: i32, %arg2: memref<1x16x256xbf16, #tpu.memory_space<vmem>>, %arg3: memref<2x16x16xbf16, #tpu.memory_space<vmem>>, %arg4: memref<2x16x1xf32, #tpu.memory_space<vmem>>, %arg5: memref<2x16x16xbf16, #tpu.memory_space<vmem>>, %arg6: memref<2x16x1xf32, #tpu.memory_space<vmem>>, %arg7: memref<1x16x256xbf16, #tpu.memory_space<vmem>>) attributes {dimension_semantics = [#tpu.dimension_semantics<parallel>, #tpu.dimension_semantics<parallel>], iteration_bounds = array<i64: 2, 1>, scalar_prefetch = 0 : i64, scratch_operands = 0 : i64, tpu.core_type = #tpu.core_type<tc>, window_params = [{transform_indices = @transform_0, window_bounds = array<i64: 1, 16, 256>}, {pipeline_mode = #tpu.pipeline_mode<synchronous>, transform_indices = @transform_1, window_bounds = array<i64: 2, 16, 16>}, {pipeline_mode = #tpu.pipeline_mode<synchronous>, transform_indices = @transform_2, window_bounds = array<i64: 2, 16, 1>}, {pipeline_mode = #tpu.pipeline_mode<synchronous>, transform_indices = @transform_3, window_bounds = array<i64: 2, 16, 16>}, {pipeline_mode = #tpu.pipeline_mode<synchronous>, transform_indices = @transform_4, window_bounds = array<i64: 2, 16, 1>}, {transform_indices = @transform_5, window_bounds = array<i64: 1, 16, 256>}]} {
    %c0 = arith.constant 0 : index
    %c0_0 = arith.constant 0 : index
    %c0_1 = arith.constant 0 : index
    %0 = vector.load %arg2[%c0, %c0_0, %c0_1] : memref<1x16x256xbf16, #tpu.memory_space<vmem>>, vector<1x16x256xbf16>
    %1 = vector.shape_cast %0 : vector<1x16x256xbf16> to vector<16x256xbf16>
    %2 = arith.extf %1 : vector<16x256xbf16> to vector<16x256xf32>
    %c0_2 = arith.constant 0 : index
    %c0_3 = arith.constant 0 : index
    %c0_4 = arith.constant 0 : index
    %3 = vector.load %arg3[%c0_2, %c0_3, %c0_4] : memref<2x16x16xbf16, #tpu.memory_space<vmem>>, vector<1x16x16xbf16>
    %4 = vector.shape_cast %3 : vector<1x16x16xbf16> to vector<16x16xbf16>
    %c0_5 = arith.constant 0 : index
    %c0_6 = arith.constant 0 : index
    %c0_7 = arith.constant 0 : index
    %5 = vector.load %arg5[%c0_5, %c0_6, %c0_7] : memref<2x16x16xbf16, #tpu.memory_space<vmem>>, vector<1x16x16xbf16>
    %6 = vector.shape_cast %5 : vector<1x16x16xbf16> to vector<16x16xbf16>
    %7 = arith.truncf %2 : vector<16x256xf32> to vector<16x256xbf16>
    %cst = arith.constant dense<0.000000e+00> : vector<16x256xf32>
    %8 = tpu.matmul %4, %7, %cst {dimension_numbers = #tpu.dot_dimension_numbers<[1], [0], [0], [1], [0, 0, 1, 1], [], []>} : vector<16x16xbf16>, vector<16x256xbf16>, vector<16x256xf32> -> vector<16x256xf32>
    %c0_8 = arith.constant 0 : index
    %c0_9 = arith.constant 0 : index
    %c0_10 = arith.constant 0 : index
    %9 = vector.load %arg4[%c0_8, %c0_9, %c0_10] : memref<2x16x1xf32, #tpu.memory_space<vmem>>, vector<1x16x1xf32>
    %10 = vector.shape_cast %9 : vector<1x16x1xf32> to vector<16x1xf32>
    %11 = vector.broadcast %10 : vector<16x1xf32> to vector<16x256xf32>
    %12 = arith.addf %8, %11 : vector<16x256xf32>
    %cst_11 = arith.constant 0.000000e+00 : f32
    %13 = vector.broadcast %cst_11 : f32 to vector<16x256xf32>
    %14 = arith.maximumf %12, %13 : vector<16x256xf32>
    %15 = arith.truncf %14 : vector<16x256xf32> to vector<16x256xbf16>
    %cst_12 = arith.constant dense<0.000000e+00> : vector<16x256xf32>
    %16 = tpu.matmul %6, %15, %cst_12 {dimension_numbers = #tpu.dot_dimension_numbers<[1], [0], [0], [1], [0, 0, 1, 1], [], []>} : vector<16x16xbf16>, vector<16x256xbf16>, vector<16x256xf32> -> vector<16x256xf32>
    %c0_13 = arith.constant 0 : index
    %c0_14 = arith.constant 0 : index
    %c0_15 = arith.constant 0 : index
    %17 = vector.load %arg6[%c0_13, %c0_14, %c0_15] : memref<2x16x1xf32, #tpu.memory_space<vmem>>, vector<1x16x1xf32>
    %18 = vector.shape_cast %17 : vector<1x16x1xf32> to vector<16x1xf32>
    %19 = vector.broadcast %18 : vector<16x1xf32> to vector<16x256xf32>
    %20 = arith.addf %16, %19 : vector<16x256xf32>
    %21 = arith.addf %20, %2 : vector<16x256xf32>
    %cst_16 = arith.constant 0.000000e+00 : f32
    %22 = vector.broadcast %cst_16 : f32 to vector<16x256xf32>
    %23 = arith.maximumf %21, %22 : vector<16x256xf32>
    %c1 = arith.constant 1 : index
    %c0_17 = arith.constant 0 : index
    %c0_18 = arith.constant 0 : index
    %24 = vector.load %arg3[%c1, %c0_17, %c0_18] : memref<2x16x16xbf16, #tpu.memory_space<vmem>>, vector<1x16x16xbf16>
    %25 = vector.shape_cast %24 : vector<1x16x16xbf16> to vector<16x16xbf16>
    %c1_19 = arith.constant 1 : index
    %c0_20 = arith.constant 0 : index
    %c0_21 = arith.constant 0 : index
    %26 = vector.load %arg5[%c1_19, %c0_20, %c0_21] : memref<2x16x16xbf16, #tpu.memory_space<vmem>>, vector<1x16x16xbf16>
    %27 = vector.shape_cast %26 : vector<1x16x16xbf16> to vector<16x16xbf16>
    %28 = arith.truncf %23 : vector<16x256xf32> to vector<16x256xbf16>
    %cst_22 = arith.constant dense<0.000000e+00> : vector<16x256xf32>
    %29 = tpu.matmul %25, %28, %cst_22 {dimension_numbers = #tpu.dot_dimension_numbers<[1], [0], [0], [1], [0, 0, 1, 1], [], []>} : vector<16x16xbf16>, vector<16x256xbf16>, vector<16x256xf32> -> vector<16x256xf32>
    %c1_23 = arith.constant 1 : index
    %c0_24 = arith.constant 0 : index
    %c0_25 = arith.constant 0 : index
    %30 = vector.load %arg4[%c1_23, %c0_24, %c0_25] : memref<2x16x1xf32, #tpu.memory_space<vmem>>, vector<1x16x1xf32>
    %31 = vector.shape_cast %30 : vector<1x16x1xf32> to vector<16x1xf32>
    %32 = vector.broadcast %31 : vector<16x1xf32> to vector<16x256xf32>
    %33 = arith.addf %29, %32 : vector<16x256xf32>
    %cst_26 = arith.constant 0.000000e+00 : f32
    %34 = vector.broadcast %cst_26 : f32 to vector<16x256xf32>
    %35 = arith.maximumf %33, %34 : vector<16x256xf32>
    %36 = arith.truncf %35 : vector<16x256xf32> to vector<16x256xbf16>
    %cst_27 = arith.constant dense<0.000000e+00> : vector<16x256xf32>
    %37 = tpu.matmul %27, %36, %cst_27 {dimension_numbers = #tpu.dot_dimension_numbers<[1], [0], [0], [1], [0, 0, 1, 1], [], []>} : vector<16x16xbf16>, vector<16x256xbf16>, vector<16x256xf32> -> vector<16x256xf32>
    %c1_28 = arith.constant 1 : index
    %c0_29 = arith.constant 0 : index
    %c0_30 = arith.constant 0 : index
    %38 = vector.load %arg6[%c1_28, %c0_29, %c0_30] : memref<2x16x1xf32, #tpu.memory_space<vmem>>, vector<1x16x1xf32>
    %39 = vector.shape_cast %38 : vector<1x16x1xf32> to vector<16x1xf32>
    %40 = vector.broadcast %39 : vector<16x1xf32> to vector<16x256xf32>
    %41 = arith.addf %37, %40 : vector<16x256xf32>
    %42 = arith.addf %41, %23 : vector<16x256xf32>
    %cst_31 = arith.constant 0.000000e+00 : f32
    %43 = vector.broadcast %cst_31 : f32 to vector<16x256xf32>
    %44 = arith.maximumf %42, %43 : vector<16x256xf32>
    %45 = arith.truncf %44 : vector<16x256xf32> to vector<16x256xbf16>
    %c0_32 = arith.constant 0 : index
    %c0_33 = arith.constant 0 : index
    %c0_34 = arith.constant 0 : index
    %46 = vector.load %arg7[%c0_32, %c0_33, %c0_34] : memref<1x16x256xbf16, #tpu.memory_space<vmem>>, vector<1x16x256xbf16>
    %47 = vector.shape_cast %46 : vector<1x16x256xbf16> to vector<16x256xbf16>
    %48 = vector.shape_cast %45 : vector<16x256xbf16> to vector<1x16x256xbf16>
    tpu.vector_store %arg7[%c0_32, %c0_33, %c0_34], %48 {strides = array<i32>} : memref<1x16x256xbf16, #tpu.memory_space<vmem>>, vector<1x16x256xbf16>,
    return
  }
  func.func @transform_0(%arg0: i32, %arg1: i32) -> (i32, i32, i32) {
    %c0_i32 = arith.constant 0 : i32
    %c0_i32_0 = arith.constant 0 : i32
    return %arg0, %c0_i32, %arg1 : i32, i32, i32
  }
  func.func @transform_1(%arg0: i32, %arg1: i32) -> (i32, i32, i32) {
    %c0_i32 = arith.constant 0 : i32
    %c0_i32_0 = arith.constant 0 : i32
    %c0_i32_1 = arith.constant 0 : i32
    %c0_i32_2 = arith.constant 0 : i32
    return %c0_i32, %c0_i32_0, %c0_i32_1 : i32, i32, i32
  }
  func.func @transform_2(%arg0: i32, %arg1: i32) -> (i32, i32, i32) {
    %c0_i32 = arith.constant 0 : i32
    %c0_i32_0 = arith.constant 0 : i32
    %c0_i32_1 = arith.constant 0 : i32
    %c0_i32_2 = arith.constant 0 : i32
    return %c0_i32, %c0_i32_0, %c0_i32_1 : i32, i32, i32
  }
  func.func @transform_3(%arg0: i32, %arg1: i32) -> (i32, i32, i32) {
    %c0_i32 = arith.constant 0 : i32
    %c0_i32_0 = arith.constant 0 : i32
    %c0_i32_1 = arith.constant 0 : i32
    %c0_i32_2 = arith.constant 0 : i32
    return %c0_i32, %c0_i32_0, %c0_i32_1 : i32, i32, i32
  }
  func.func @transform_4(%arg0: i32, %arg1: i32) -> (i32, i32, i32) {
    %c0_i32 = arith.constant 0 : i32
    %c0_i32_0 = arith.constant 0 : i32
    %c0_i32_1 = arith.constant 0 : i32
    %c0_i32_2 = arith.constant 0 : i32
    return %c0_i32, %c0_i32_0, %c0_i32_1 : i32, i32, i32
  }
  func.func @transform_5(%arg0: i32, %arg1: i32) -> (i32, i32, i32) {
    %c0_i32 = arith.constant 0 : i32
    %c0_i32_0 = arith.constant 0 : i32
    return %arg0, %c0_i32, %arg1 : i32, i32, i32
  }
}

</mosaic_0001>

<llo_original>
// kernel: tpu_custom_call.1
$region0: #{tpu_custom_call.1}
  #allocation0 [shape = 'u32[]', space=smem, size = 0x4, offset = 0x4, fixed_abs, tag = 'smem constant byte address 0x4 - core index']
  #allocation1 [shape = 'u32[144,128]{1,0:T(1,128)}', space=vmem, size = 0x12000, scoped, tag = 'internal scratch']
  %s0 = inlined_call_operand.hbm [shape: bf16[2,16,256], index: 0, kind: input, shape index: {}, may-alias: {0,5}]
  %s1 = inlined_call_operand.vmem [shape: bf16[2,16,16], index: 1, kind: input, shape index: {}]
  %s2 = inlined_call_operand.vmem [shape: f32[2,16,1], index: 2, kind: input, shape index: {}]
  %s3 = inlined_call_operand.vmem [shape: bf16[2,16,16], index: 3, kind: input, shape index: {}]
  %s4 = inlined_call_operand.vmem [shape: f32[2,16,1], index: 4, kind: input, shape index: {}]
  %s5 = inlined_call_operand.hbm [shape: bf16[2,16,256], index: 5, kind: output, shape index: {}, may-alias: {0,5}]
  %s6 = sld [smem:[#allocation0]]
  $region57: #{tpu_custom_call.1} parent=0
    _
  %s8 = ssub.s32 1, %s6
  %s9 = scalar_select 0, %s8, %s6
  $region1: #{tpu_custom_call.1} parent=0
    #allocation2 [shape = 'u8[16384]{0}', space=vmem, size = 0x4000, scoped, tag = 'input window, operand 0']
    #allocation3 [shape = 's32[2]{0}', space=sflag, size = 0x8, scoped, tag = 'scoped memory for tpu_custom_call.1']
    #allocation4 [shape = 's32[2]{0}', space=sflag, size = 0x8, scoped, tag = 'scoped memory for tpu_custom_call.1']
    #allocation5 [shape = 'u8[16384]{0}', space=vmem, size = 0x4000, scoped, tag = 'output window, operand 0']
    %10 = vsyncpa [#allocation3], 0
    %s11 = scalar_lea.sflag [#allocation3], 1
    %12 = vsyncpa %s11, 0
    %13 = vsyncpa [#allocation4], 0
    %s14 = scalar_lea.sflag [#allocation4], 1
    %15 = vsyncpa %s14, 0
    loop: start=0, step=1, limit=4
    $region2: #{tpu_custom_call.1} parent=1 // loop_pre_header
      _
    $region3: #{tpu_custom_call.1} parent=1 // loop_header
      %s17 = sphi 0, %s21
      %p18 = scmp.ge.s32.totalorder %s17, 4
      %s24 = sphi 0, %s36
      %s25 = sphi 0, %s32
      %s26 = sphi 0, %s24
      %s27 = sphi 0, %s25
      %s28 = sphi 0, %s26
      %s29 = sphi 0, %s27
      %s41 = sphi 0, %s43
      %s44 = sphi 0, %s41
      %s45 = sphi 0, %s44
      %s61 = sphi 0, %s45
      %s65 = sphi 0, %s65
      %s67 = sphi 0, %s65
      %s68 = sphi 0, %s67
      %s82 = sphi 0, %s68
      %s86 = sphi 0, %s86
      %s88 = sphi 0, %s86
      %s89 = sphi 0, %s88
      %s103 = sphi 0, %s89
      %s107 = sphi 0, %s107
      %s109 = sphi 0, %s107
      %s110 = sphi 0, %s109
      %s124 = sphi 0, %s110
      %s128 = sphi 0, %s128
      %s130 = sphi 0, %s128
      %s131 = sphi 0, %s130
      %s145 = sphi 0, %s131
      %s153 = sphi 0, %s155
      %s156 = sphi 0, %s153
      %s157 = sphi 0, %s156
      %s173 = sphi 0, %s157
    $region4: #{tpu_custom_call.1} parent=1 // loop_header_branch
      %20 = sbr.rel (%p18) target = $region8
    $region5: #{tpu_custom_call.1} parent=1 // loop_body
      %s22 = ssub.s32 %s17, 1
      %s23 = ssub.s32 %s17, 2
      %s30 = sadd.s32 1, %s25
      %p31 = scmp.ge.s32.totalorder %s30, 1
      %s32 = scalar_select %p31, 0, %s30
      %s33 = sadd.s32 1, %s24
      %s34 = scalar_select %p31, %s33, %s24
      %p35 = scmp.ge.s32.totalorder %s34, 2
      %s36 = scalar_select %p35, 0, %s34
      %s37 = ssub.s32 %s24, %s36
      %s38 = ssub.s32 %s25, %s32
      %s39 = sor.u32 %s37, %s38
      %p40 = scmp.eq.s32.totalorder %s39, 0
      %s42 = sadd.s32 %s41, 1
      %s43 = scalar_select %p40, %s41, %s42
      %p46 = pneg %p40
      %p47 = scmp.eq.s32.totalorder %s17, 1
      %p48 = por %p46, %p47
      %p49 = scmp.ne.s32.totalorder %s41, %s44
      %p50 = scmp.eq.s32.totalorder %s17, 0
      %p51 = por %p49, %p50
      %p52 = scmp.ne.s32.totalorder %s41, %s44
      %p53 = scmp.eq.s32.totalorder %s22, 1
      %p54 = por %p52, %p53
      %p55 = scmp.ne.s32.totalorder %s44, %s45
      %p56 = scmp.eq.s32.totalorder %s22, 0
      %p57 = por %p55, %p56
      %p58 = scmp.ne.s32.totalorder %s44, %s45
      %p59 = scmp.eq.s32.totalorder %s23, 1
      %p60 = por %p58, %p59
      %p62 = scmp.ne.s32.totalorder %s45, %s61
      %p63 = scmp.eq.s32.totalorder %s23, 0
      %p64 = por %p62, %p63
      %s66 = sadd.s32 %s65, 1
      %p69 = scmp.eq.s32.totalorder %s17, 1
      %p70 = scmp.ne.s32.totalorder %s65, %s67
      %p71 = scmp.eq.s32.totalorder %s17, 0
      %p72 = por %p70, %p71
      %p73 = scmp.ne.s32.totalorder %s65, %s67
      %p74 = scmp.eq.s32.totalorder %s22, 1
      %p75 = por %p73, %p74
      %p76 = scmp.ne.s32.totalorder %s67, %s68
      %p77 = scmp.eq.s32.totalorder %s22, 0
      %p78 = por %p76, %p77
      %p79 = scmp.ne.s32.totalorder %s67, %s68
      %p80 = scmp.eq.s32.totalorder %s23, 1
      %p81 = por %p79, %p80
      %p83 = scmp.ne.s32.totalorder %s68, %s82
      %p84 = scmp.eq.s32.totalorder %s23, 0
      %p85 = por %p83, %p84
      %s87 = sadd.s32 %s86, 1
      %p90 = scmp.eq.s32.totalorder %s17, 1
      %p91 = scmp.ne.s32.totalorder %s86, %s88
      %p92 = scmp.eq.s32.totalorder %s17, 0
      %p93 = por %p91, %p92
      %p94 = scmp.ne.s32.totalorder %s86, %s88
      %p95 = scmp.eq.s32.totalorder %s22, 1
      %p96 = por %p94, %p95
      %p97 = scmp.ne.s32.totalorder %s88, %s89
      %p98 = scmp.eq.s32.totalorder %s22, 0
      %p99 = por %p97, %p98
      %p100 = scmp.ne.s32.totalorder %s88, %s89
      %p101 = scmp.eq.s32.totalorder %s23, 1
      %p102 = por %p100, %p101
      %p104 = scmp.ne.s32.totalorder %s89, %s103
      %p105 = scmp.eq.s32.totalorder %s23, 0
      %p106 = por %p104, %p105
      %s108 = sadd.s32 %s107, 1
      %p111 = scmp.eq.s32.totalorder %s17, 1
      %p112 = scmp.ne.s32.totalorder %s107, %s109
      %p113 = scmp.eq.s32.totalorder %s17, 0
      %p114 = por %p112, %p113
      %p115 = scmp.ne.s32.totalorder %s107, %s109
      %p116 = scmp.eq.s32.totalorder %s22, 1
      %p117 = por %p115, %p116
      %p118 = scmp.ne.s32.totalorder %s109, %s110
      %p119 = scmp.eq.s32.totalorder %s22, 0
      %p120 = por %p118, %p119
      %p121 = scmp.ne.s32.totalorder %s109, %s110
      %p122 = scmp.eq.s32.totalorder %s23, 1
      %p123 = por %p121, %p122
      %p125 = scmp.ne.s32.totalorder %s110, %s124
      %p126 = scmp.eq.s32.totalorder %s23, 0
      %p127 = por %p125, %p126
      %s129 = sadd.s32 %s128, 1
      %p132 = scmp.eq.s32.totalorder %s17, 1
      %p133 = scmp.ne.s32.totalorder %s128, %s130
      %p134 = scmp.eq.s32.totalorder %s17, 0
      %p135 = por %p133, %p134
      %p136 = scmp.ne.s32.totalorder %s128, %s130
      %p137 = scmp.eq.s32.totalorder %s22, 1
      %p138 = por %p136, %p137
      %p139 = scmp.ne.s32.totalorder %s130, %s131
      %p140 = scmp.eq.s32.totalorder %s22, 0
      %p141 = por %p139, %p140
      %p142 = scmp.ne.s32.totalorder %s130, %s131
      %p143 = scmp.eq.s32.totalorder %s23, 1
      %p144 = por %p142, %p143
      %p146 = scmp.ne.s32.totalorder %s131, %s145
      %p147 = scmp.eq.s32.totalorder %s23, 0
      %p148 = por %p146, %p147
      %s149 = ssub.s32 %s24, %s36
      %s150 = ssub.s32 %s25, %s32
      %s151 = sor.u32 %s149, %s150
      %p152 = scmp.eq.s32.totalorder %s151, 0
      %s154 = sadd.s32 %s153, 1
      %s155 = scalar_select %p152, %s153, %s154
      %p158 = pneg %p152
      %p159 = scmp.eq.s32.totalorder %s17, 1
      %p160 = por %p158, %p159
      %p161 = scmp.ne.s32.totalorder %s153, %s156
      %p162 = scmp.eq.s32.totalorder %s17, 0
      %p163 = por %p161, %p162
      %p164 = scmp.ne.s32.totalorder %s153, %s156
      %p165 = scmp.eq.s32.totalorder %s22, 1
      %p166 = por %p164, %p165
      %p167 = scmp.ne.s32.totalorder %s156, %s157
      %p168 = scmp.eq.s32.totalorder %s22, 0
      %p169 = por %p167, %p168
      %p170 = scmp.ne.s32.totalorder %s156, %s157
      %p171 = scmp.eq.s32.totalorder %s23, 1
      %p172 = por %p170, %p171
      %p174 = scmp.ne.s32.totalorder %s157, %s173
      %p175 = scmp.eq.s32.totalorder %s23, 0
      %p176 = por %p174, %p175
      %p177 = scmp.le.s32.totalorder 1, %s17
      %p178 = scmp.lt.s32.totalorder %s17, 3
      %p179 = pnand %p177, %p178
      %p180 = pneg %p179
      // Predicated region
      $region9: #{tpu_custom_call.1} parent=5 // pred_check
        _
      $region10: #{tpu_custom_call.1} parent=5 // pred_check_branch
        %182 = sbr.rel (%p179) target = $region12
      $region11: #{tpu_custom_call.1} parent=5 // pred_region
        %s183 = ssub.s32 %s17, 1
        // Predicated region
        $region13: #{tpu_custom_call.1} parent=11 // pred_check
          %p184 = pneg %p78
        $region14: #{tpu_custom_call.1} parent=11 // pred_check_branch
          %186 = sbr.rel (%p184) target = $region16
        $region15: #{tpu_custom_call.1} parent=11 // pred_region
          _
        $region16: #{tpu_custom_call.1} parent=11 // pred_fallthru
          _
        // Predicated region
        $region17: #{tpu_custom_call.1} parent=11 // pred_check
          %p187 = pneg %p99
        $region18: #{tpu_custom_call.1} parent=11 // pred_check_branch
          %189 = sbr.rel (%p187) target = $region20
        $region19: #{tpu_custom_call.1} parent=11 // pred_region
          _
        $region20: #{tpu_custom_call.1} parent=11 // pred_fallthru
          _
        // Predicated region
        $region21: #{tpu_custom_call.1} parent=11 // pred_check
          %p190 = pneg %p120
        $region22: #{tpu_custom_call.1} parent=11 // pred_check_branch
          %192 = sbr.rel (%p190) target = $region24
        $region23: #{tpu_custom_call.1} parent=11 // pred_region
          _
        $region24: #{tpu_custom_call.1} parent=11 // pred_fallthru
          _
        // Predicated region
        $region25: #{tpu_custom_call.1} parent=11 // pred_check
          %p193 = pneg %p141
        $region26: #{tpu_custom_call.1} parent=11 // pred_check_branch
          %195 = sbr.rel (%p193) target = $region28
        $region27: #{tpu_custom_call.1} parent=11 // pred_region
          _
        $region28: #{tpu_custom_call.1} parent=11 // pred_fallthru
          _
      $region12: #{tpu_custom_call.1} parent=5 // pred_fallthru
        _
      %p196 = scmp.lt.s32.totalorder %s17, 2
      // Predicated region
      $region29: #{tpu_custom_call.1} parent=5 // pred_check
        %p197 = pneg %p196
      $region30: #{tpu_custom_call.1} parent=5 // pred_check_branch
        %199 = sbr.rel (%p197) target = $region32
      $region31: #{tpu_custom_call.1} parent=5 // pred_region
        // Predicated region
        $region33: #{tpu_custom_call.1} parent=31 // pred_check
          %p200 = pneg %p51
        $region34: #{tpu_custom_call.1} parent=31 // pred_check_branch
          %202 = sbr.rel (%p200) target = $region36
        $region35: #{tpu_custom_call.1} parent=31 // pred_region
          %s203 = sand.u32 %s41, 1
          %s204 = scalar_lea.sflag [#allocation3], %s203
          %s205 = sand.u32 %s41, 1
          %s206 = smul.addr %s205, 16
          %s207 = scalar_lea.vmem [#allocation2], %s206
          %s208 = smul.u32 2, %s25
          %s210 = ssub.s32 256, 256
          %211 = vsyncadd %s204, %s210
          %s212 = smul.addr %s24, 4
          %s213 = sadd.s32 %s208, %s212
          %s214 = smul.addr %s213, 64
          %s215 = scalar_lea.hbm %s0, %s214
          %s216 = sshll.u32 %s207, 4
          %s217 = int_to_ptr.vmem [resolvable:$true] %s216
          %222 = dma.hbm_to_vmem [thread:$0]  %s215, 256, %s217, %s204, 128, 128, 8
        $region36: #{tpu_custom_call.1} parent=31 // pred_fallthru
          _
      $region32: #{tpu_custom_call.1} parent=5 // pred_fallthru
        _
      %p223 = scmp.le.s32.totalorder 1, %s17
      %p224 = scmp.lt.s32.totalorder %s17, 3
      %p225 = pnand %p223, %p224
      %p226 = pneg %p225
      // Predicated region
      $region37: #{tpu_custom_call.1} parent=5 // pred_check
        _
      $region38: #{tpu_custom_call.1} parent=5 // pred_check_branch
        %228 = sbr.rel (%p225) target = $region40
      $region39: #{tpu_custom_call.1} parent=5 // pred_region
        %s229 = ssub.s32 %s17, 1
        %s230 = sand.u32 %s44, 1
        %s231 = scalar_lea.sflag [#allocation3], %s230
        %s232 = sand.u32 %s44, 1
        %s233 = smul.addr %s232, 16
        %s234 = scalar_lea.vmem [#allocation2], %s233
        // Predicated region
        $region41: #{tpu_custom_call.1} parent=39 // pred_check
          %p235 = pneg %p57
        $region42: #{tpu_custom_call.1} parent=39 // pred_check_branch
          %237 = sbr.rel (%p235) target = $region44
        $region43: #{tpu_custom_call.1} parent=39 // pred_region
          %238 = dma.done %s231, 256
        $region44: #{tpu_custom_call.1} parent=39 // pred_fallthru
          _
        %s239 = sand.u32 %s44, 1
        %s240 = scalar_lea.sflag [#allocation3], %s239
        %s241 = sand.u32 %s44, 1
        %s242 = smul.addr %s241, 16
        %s243 = scalar_lea.vmem [#allocation2], %s242
        %p244 = pneg %p57
        %p245 = pneg %p54
        %p246 = pneg %p78
        %p247 = pneg %p75
        %p248 = pneg %p99
        %p249 = pneg %p96
        %p250 = pneg %p120
        %p251 = pneg %p117
        %p252 = pneg %p141
        %p253 = pneg %p138
        %p254 = pneg %p169
        %p255 = pneg %p166
        %s256 = sand.u32 %s156, 1
        %s257 = scalar_lea.sflag [#allocation4], %s256
        %s258 = sand.u32 %s156, 1
        %s259 = smul.addr %s258, 16
        %s260 = scalar_lea.vmem [#allocation5], %s259
        %s261 = smul.u32 2, %s27
        %s262 = smul.u32 2, %s27
        %v264 = vld [vmem:[%s234] sm:$0xff]
        %v265 = vld [vmem:[%s234 + $0x8] sm:$0xff]
        %v266 = vunpack.c.l.bf16 %v264
        %v267 = vunpack.c.h.bf16 %v264
        %v268 = vunpack.c.l.bf16 %v265
        %v269 = vunpack.c.h.bf16 %v265
        %v270 = vld [vmem:[%s1] sm:$0xf]
        %v271 = vld [vmem:[%s1 + $0x4] sm:$0xf]
        %v272 = vld [vmem:[%s3] sm:$0xf]
        %v273 = vld [vmem:[%s3 + $0x4] sm:$0xf]
        %v274 = vld [vmem:[%s2] sm:$0xff]
        %v275 = vld [vmem:[%s2 + $0x8] sm:$0xff]
        %277 = vset.pattern.permute.xlu0 0
        %278 = vperm.xlu0 %277, %v274
        %v279 = vpop.permute.xlu0 %278
        %282 = vset.pattern.permute.xlu0 0
        %283 = vperm.xlu0 %282, %v275
        %v284 = vpop.permute.xlu0 %283
        %v288 = vunpack.c.l.b16 %v270
        %v289 = vunpack.c.l.b16 %v271
        %v290 = vpack.c.b16 %v289, %v288
        %v293 = vunpack.c.l.b16 %v264
        %v294 = vunpack.c.h.b16 %v264
        %v295 = vunpack.c.l.b16 %v265
        %v296 = vunpack.c.h.b16 %v265
        %v297 = vpack.c.b16 %v295, %v293
        %v298 = vpack.c.b16 %v296, %v294
        %vm301 = vcmask 130048
        %v303 = vsel %vm301, %v290, 0
        %305 = vmatprep.subr.bf16.mxu0 0
        %306 = vmatpush1.bf16.msra.mxu0 0
        %307 = vmatprep.subr.bf16.mxu0 0
        %308 = vmatpush1.bf16.msra.mxu0 0
        %309 = vmatprep.subr.bf16.mxu0 0
        %310 = vmatpush1.bf16.msra.mxu0 0
        %311 = vmatprep.subr.bf16.mxu0 0
        %312 = vmatpush1.bf16.msra.mxu0 0
        %313 = vmatprep.subr.bf16.mxu0 0
        %314 = vmatpush1.bf16.msra.mxu0 0
        %315 = vmatprep.subr.bf16.mxu0 0
        %316 = vmatpush1.bf16.msra.mxu0 0
        %317 = vmatprep.subr.bf16.mxu0 0
        %318 = vmatpush1.bf16.msra.mxu0 0
        %319 = vmatprep.subr.bf16.mxu0 %v298
        %320 = vmatpush1.bf16.msra.mxu0 %v297
        %321 = vmatprep.subr.bf16.mxu0 0
        %322 = vmatpush2.bf16.msra.mxu0 0
        %323 = vmatprep.subr.bf16.mxu0 0
        %324 = vmatpush2.bf16.msra.mxu0 0
        %325 = vmatprep.subr.bf16.mxu0 0
        %326 = vmatpush2.bf16.msra.mxu0 0
        %327 = vmatprep.subr.bf16.mxu0 0
        %328 = vmatpush2.bf16.msra.mxu0 0
        %329 = vmatprep.subr.bf16.mxu0 0
        %330 = vmatpush2.bf16.msra.mxu0 0
        %331 = vmatprep.subr.bf16.mxu0 0
        %332 = vmatpush2.bf16.msra.mxu0 0
        %333 = vmatprep.subr.bf16.mxu0 0
        %334 = vmatpush2.bf16.msra.mxu0 0
        %335 = vmatprep.subr.bf16.mxu0 0
        %336 = vmatpush2.bf16.msra.mxu0 0
        %337 = vmatprep.mubr.bf16.mxu0 0
        %338 = vmatmul.mubr.bf16.gmra.mxu0 %v303
        %v339 = vpop.f32.mrf.mxu0
        %v340 = vadd.f32 %v279, %v339
        %v341 = vpop.f32.mrf.mxu0
        %v342 = vadd.f32 %v279, %v341
        %v343 = vpop.f32.mrf.mxu0
        %v344 = vadd.f32 %v284, %v343
        %v345 = vpop.f32.mrf.mxu0
        %v346 = vadd.f32 %v284, %v345
        %347 = vdwg.mxu0
        %v348 = vmax.f32 %v340, 0.0
        %v349 = vmax.f32 %v342, 0.0
        %v350 = vmax.f32 %v344, 0.0
        %v351 = vmax.f32 %v346, 0.0
        %v352 = vpack.c.bf16 %v350, %v348
        %v353 = vpack.c.bf16 %v351, %v349
        %v354 = vld [vmem:[%s4] sm:$0xff]
        %v355 = vld [vmem:[%s4 + $0x8] sm:$0xff]
        %357 = vset.pattern.permute.xlu0 0
        %358 = vperm.xlu0 %357, %v354
        %v359 = vpop.permute.xlu0 %358
        %362 = vset.pattern.permute.xlu0 0
        %363 = vperm.xlu0 %362, %v355
        %v364 = vpop.permute.xlu0 %363
        %v368 = vunpack.c.l.b16 %v272
        %v369 = vunpack.c.l.b16 %v273
        %v370 = vpack.c.b16 %v369, %v368
        %v372 = vsel %vm301, %v370, 0
        %374 = vmatprep.subr.bf16.mxu0 0
        %375 = vmatpush1.bf16.msra.mxu0 0
        %376 = vmatprep.subr.bf16.mxu0 0
        %377 = vmatpush1.bf16.msra.mxu0 0
        %378 = vmatprep.subr.bf16.mxu0 0
        %379 = vmatpush1.bf16.msra.mxu0 0
        %380 = vmatprep.subr.bf16.mxu0 0
        %381 = vmatpush1.bf16.msra.mxu0 0
        %382 = vmatprep.subr.bf16.mxu0 0
        %383 = vmatpush1.bf16.msra.mxu0 0
        %384 = vmatprep.subr.bf16.mxu0 0
        %385 = vmatpush1.bf16.msra.mxu0 0
        %386 = vmatprep.subr.bf16.mxu0 0
        %387 = vmatpush1.bf16.msra.mxu0 0
        %388 = vmatprep.subr.bf16.mxu0 %v353
        %389 = vmatpush1.bf16.msra.mxu0 %v352
        %390 = vmatprep.subr.bf16.mxu0 0
        %391 = vmatpush2.bf16.msra.mxu0 0
        %392 = vmatprep.subr.bf16.mxu0 0
        %393 = vmatpush2.bf16.msra.mxu0 0
        %394 = vmatprep.subr.bf16.mxu0 0
        %395 = vmatpush2.bf16.msra.mxu0 0
        %396 = vmatprep.subr.bf16.mxu0 0
        %397 = vmatpush2.bf16.msra.mxu0 0
        %398 = vmatprep.subr.bf16.mxu0 0
        %399 = vmatpush2.bf16.msra.mxu0 0
        %400 = vmatprep.subr.bf16.mxu0 0
        %401 = vmatpush2.bf16.msra.mxu0 0
        %402 = vmatprep.subr.bf16.mxu0 0
        %403 = vmatpush2.bf16.msra.mxu0 0
        %404 = vmatprep.subr.bf16.mxu0 0
        %405 = vmatpush2.bf16.msra.mxu0 0
        %406 = vmatprep.mubr.bf16.mxu0 0
        %407 = vmatmul.mubr.bf16.gmra.mxu0 %v372
        %v408 = vpop.f32.mrf.mxu0
        %v409 = vadd.f32 %v359, %v408
        %v410 = vpop.f32.mrf.mxu0
        %v411 = vadd.f32 %v359, %v410
        %v412 = vpop.f32.mrf.mxu0
        %v413 = vadd.f32 %v364, %v412
        %v414 = vpop.f32.mrf.mxu0
        %v415 = vadd.f32 %v364, %v414
        %416 = vdwg.mxu0
        %v417 = vadd.f32 %v409, %v266
        %v418 = vadd.f32 %v411, %v267
        %v419 = vadd.f32 %v413, %v268
        %v420 = vadd.f32 %v415, %v269
        %v421 = vmax.f32 %v417, 0.0
        %v422 = vmax.f32 %v418, 0.0
        %v423 = vmax.f32 %v419, 0.0
        %v424 = vmax.f32 %v420, 0.0
        %s425 = scalar_lea.vmem %s1, 8
        %v426 = vld [vmem:[%s425] sm:$0xf]
        %v427 = vld [vmem:[%s425 + $0x4] sm:$0xf]
        %s428 = scalar_lea.vmem %s3, 8
        %v429 = vld [vmem:[%s428] sm:$0xf]
        %v430 = vld [vmem:[%s428 + $0x4] sm:$0xf]
        %v431 = vpack.c.bf16 %v423, %v421
        %v432 = vpack.c.bf16 %v424, %v422
        %s433 = scalar_lea.vmem %s2, 16
        %v434 = vld [vmem:[%s433] sm:$0xff]
        %v435 = vld [vmem:[%s433 + $0x8] sm:$0xff]
        %437 = vset.pattern.permute.xlu0 0
        %438 = vperm.xlu0 %437, %v434
        %v439 = vpop.permute.xlu0 %438
        %442 = vset.pattern.permute.xlu0 0
        %443 = vperm.xlu0 %442, %v435
        %v444 = vpop.permute.xlu0 %443
        %v448 = vunpack.c.l.b16 %v426
        %v449 = vunpack.c.l.b16 %v427
        %v450 = vpack.c.b16 %v449, %v448
        %v452 = vsel %vm301, %v450, 0
        %454 = vmatprep.subr.bf16.mxu0 0
        %455 = vmatpush1.bf16.msra.mxu0 0
        %456 = vmatprep.subr.bf16.mxu0 0
        %457 = vmatpush1.bf16.msra.mxu0 0
        %458 = vmatprep.subr.bf16.mxu0 0
        %459 = vmatpush1.bf16.msra.mxu0 0
        %460 = vmatprep.subr.bf16.mxu0 0
        %461 = vmatpush1.bf16.msra.mxu0 0
        %462 = vmatprep.subr.bf16.mxu0 0
        %463 = vmatpush1.bf16.msra.mxu0 0
        %464 = vmatprep.subr.bf16.mxu0 0
        %465 = vmatpush1.bf16.msra.mxu0 0
        %466 = vmatprep.subr.bf16.mxu0 0
        %467 = vmatpush1.bf16.msra.mxu0 0
        %468 = vmatprep.subr.bf16.mxu0 %v432
        %469 = vmatpush1.bf16.msra.mxu0 %v431
        %470 = vmatprep.subr.bf16.mxu0 0
        %471 = vmatpush2.bf16.msra.mxu0 0
        %472 = vmatprep.subr.bf16.mxu0 0
        %473 = vmatpush2.bf16.msra.mxu0 0
        %474 = vmatprep.subr.bf16.mxu0 0
        %475 = vmatpush2.bf16.msra.mxu0 0
        %476 = vmatprep.subr.bf16.mxu0 0
        %477 = vmatpush2.bf16.msra.mxu0 0
        %478 = vmatprep.subr.bf16.mxu0 0
        %479 = vmatpush2.bf16.msra.mxu0 0
        %480 = vmatprep.subr.bf16.mxu0 0
        %481 = vmatpush2.bf16.msra.mxu0 0
        %482 = vmatprep.subr.bf16.mxu0 0
        %483 = vmatpush2.bf16.msra.mxu0 0
        %484 = vmatprep.subr.bf16.mxu0 0
        %485 = vmatpush2.bf16.msra.mxu0 0
        %486 = vmatprep.mubr.bf16.mxu0 0
        %487 = vmatmul.mubr.bf16.gmra.mxu0 %v452
        %v488 = vpop.f32.mrf.mxu0
        %v489 = vadd.f32 %v439, %v488
        %v490 = vpop.f32.mrf.mxu0
        %v491 = vadd.f32 %v439, %v490
        %v492 = vpop.f32.mrf.mxu0
        %v493 = vadd.f32 %v444, %v492
        %v494 = vpop.f32.mrf.mxu0
        %v495 = vadd.f32 %v444, %v494
        %496 = vdwg.mxu0
        %v497 = vmax.f32 %v489, 0.0
        %v498 = vmax.f32 %v491, 0.0
        %v499 = vmax.f32 %v493, 0.0
        %v500 = vmax.f32 %v495, 0.0
        %v501 = vpack.c.bf16 %v499, %v497
        %v502 = vpack.c.bf16 %v500, %v498
        %s503 = scalar_lea.vmem %s4, 16
        %v504 = vld [vmem:[%s503] sm:$0xff]
        %v505 = vld [vmem:[%s503 + $0x8] sm:$0xff]
        %507 = vset.pattern.permute.xlu0 0
        %508 = vperm.xlu0 %507, %v504
        %v509 = vpop.permute.xlu0 %508
        %512 = vset.pattern.permute.xlu0 0
        %513 = vperm.xlu0 %512, %v505
        %v514 = vpop.permute.xlu0 %513
        %v518 = vunpack.c.l.b16 %v429
        %v519 = vunpack.c.l.b16 %v430
        %v520 = vpack.c.b16 %v519, %v518
        %v522 = vsel %vm301, %v520, 0
        %524 = vmatprep.subr.bf16.mxu0 0
        %525 = vmatpush1.bf16.msra.mxu0 0
        %526 = vmatprep.subr.bf16.mxu0 0
        %527 = vmatpush1.bf16.msra.mxu0 0
        %528 = vmatprep.subr.bf16.mxu0 0
        %529 = vmatpush1.bf16.msra.mxu0 0
        %530 = vmatprep.subr.bf16.mxu0 0
        %531 = vmatpush1.bf16.msra.mxu0 0
        %532 = vmatprep.subr.bf16.mxu0 0
        %533 = vmatpush1.bf16.msra.mxu0 0
        %534 = vmatprep.subr.bf16.mxu0 0
        %535 = vmatpush1.bf16.msra.mxu0 0
        %536 = vmatprep.subr.bf16.mxu0 0
        %537 = vmatpush1.bf16.msra.mxu0 0
        %538 = vmatprep.subr.bf16.mxu0 %v502
        %539 = vmatpush1.bf16.msra.mxu0 %v501
        %540 = vmatprep.subr.bf16.mxu0 0
        %541 = vmatpush2.bf16.msra.mxu0 0
        %542 = vmatprep.subr.bf16.mxu0 0
        %543 = vmatpush2.bf16.msra.mxu0 0
        %544 = vmatprep.subr.bf16.mxu0 0
        %545 = vmatpush2.bf16.msra.mxu0 0
        %546 = vmatprep.subr.bf16.mxu0 0
        %547 = vmatpush2.bf16.msra.mxu0 0
        %548 = vmatprep.subr.bf16.mxu0 0
        %549 = vmatpush2.bf16.msra.mxu0 0
        %550 = vmatprep.subr.bf16.mxu0 0
        %551 = vmatpush2.bf16.msra.mxu0 0
        %552 = vmatprep.subr.bf16.mxu0 0
        %553 = vmatpush2.bf16.msra.mxu0 0
        %554 = vmatprep.subr.bf16.mxu0 0
        %555 = vmatpush2.bf16.msra.mxu0 0
        %556 = vmatprep.mubr.bf16.mxu0 0
        %557 = vmatmul.mubr.bf16.gmra.mxu0 %v522
        %v558 = vpop.f32.mrf.mxu0
        %v559 = vadd.f32 %v509, %v558
        %v560 = vpop.f32.mrf.mxu0
        %v561 = vadd.f32 %v509, %v560
        %v562 = vpop.f32.mrf.mxu0
        %v563 = vadd.f32 %v514, %v562
        %v564 = vpop.f32.mrf.mxu0
        %v565 = vadd.f32 %v514, %v564
        %566 = vdwg.mxu0
        %v567 = vadd.f32 %v559, %v421
        %v568 = vadd.f32 %v561, %v422
        %v569 = vadd.f32 %v563, %v423
        %v570 = vadd.f32 %v565, %v424
        %v571 = vmax.f32 %v567, 0.0
        %v572 = vmax.f32 %v568, 0.0
        %v573 = vmax.f32 %v569, 0.0
        %v574 = vmax.f32 %v570, 0.0
        %v575 = vpack.c.bf16 %v573, %v571
        %v576 = vpack.c.bf16 %v574, %v572
        %v579 = vunpack.c.l.b16 %v575
        %v580 = vunpack.c.l.b16 %v576
        %v581 = vunpack.c.h.b16 %v575
        %v582 = vunpack.c.h.b16 %v576
        %v583 = vpack.c.b16 %v580, %v579
        %v584 = vpack.c.b16 %v582, %v581
        %587 = vst [vmem:[%s260] sm:$0xff] %v583
        %588 = vst [vmem:[%s260 + $0x8] sm:$0xff] %v584
        %s589 = sand.u32 %s156, 1
        %s590 = scalar_lea.sflag [#allocation4], %s589
        %s591 = sand.u32 %s156, 1
        %s592 = smul.addr %s591, 16
        %s593 = scalar_lea.vmem [#allocation5], %s592
        // Predicated region
        $region45: #{tpu_custom_call.1} parent=39 // pred_check
          %p594 = pneg %p166
        $region46: #{tpu_custom_call.1} parent=39 // pred_check_branch
          %596 = sbr.rel (%p594) target = $region48
        $region47: #{tpu_custom_call.1} parent=39 // pred_region
          %s597 = smul.u32 2, %s27
          %s599 = ssub.s32 256, 256
          %600 = vsyncadd %s590, %s599
          %s601 = smul.addr %s26, 4
          %s602 = sadd.s32 %s597, %s601
          %s603 = smul.addr %s602, 64
          %s604 = scalar_lea.hbm %s5, %s603
          %s605 = sshll.u32 %s593, 4
          %s606 = int_to_ptr.vmem [resolvable:$true] %s605
          %611 = dma.vmem_to_hbm [thread:$0]  %s606, 256, %s604, %s590, 128, 128, 8
        $region48: #{tpu_custom_call.1} parent=39 // pred_fallthru
          _
      $region40: #{tpu_custom_call.1} parent=5 // pred_fallthru
        _
      %p612 = scmp.le.s32.totalorder 2, %s17
      // Predicated region
      $region49: #{tpu_custom_call.1} parent=5 // pred_check
        %p613 = pneg %p612
      $region50: #{tpu_custom_call.1} parent=5 // pred_check_branch
        %615 = sbr.rel (%p613) target = $region52
      $region51: #{tpu_custom_call.1} parent=5 // pred_region
        %s616 = ssub.s32 %s17, 2
        // Predicated region
        $region53: #{tpu_custom_call.1} parent=51 // pred_check
          %p617 = pneg %p172
        $region54: #{tpu_custom_call.1} parent=51 // pred_check_branch
          %619 = sbr.rel (%p617) target = $region56
        $region55: #{tpu_custom_call.1} parent=51 // pred_region
          %s620 = sand.u32 %s157, 1
          %s621 = scalar_lea.sflag [#allocation4], %s620
          %s622 = sand.u32 %s157, 1
          %s623 = smul.addr %s622, 16
          %s624 = scalar_lea.vmem [#allocation5], %s623
          %625 = dma.done %s621, 256
        $region56: #{tpu_custom_call.1} parent=51 // pred_fallthru
          _
      $region52: #{tpu_custom_call.1} parent=5 // pred_fallthru
        _
    $region6: #{tpu_custom_call.1} parent=1 // loop_footer
      %s21 = sadd.s32 1, %s17
    $region7: #{tpu_custom_call.1} parent=1 // loop_footer_branch
      %16 = sbr.rel target = $region3
    $region8: #{tpu_custom_call.1} parent=1 // loop_exit
      _
    %626 = vsyncpa [#allocation3], 1
    %s627 = scalar_lea.sflag [#allocation3], 1
    %628 = vsyncpa %s627, 1
    %629 = vsyncpa [#allocation4], 1
    %s630 = scalar_lea.sflag [#allocation4], 1
    %631 = vsyncpa %s630, 1

</llo_original>
